<compile_context>
chip_gen: v7x
topology: tpu7x:2x2x1
jax: 0.10.0
libtpu: 0.0.40
codegen_flags: <defaults>
</compile_context>

<pallas_src>
import functools
import math

import jax
import jax.numpy as jnp
from jax.experimental import pallas as pl
from jax.experimental.pallas import tpu as pltpu

_LOG2 = math.log(2.0)
_LANES = 128
_SUBLANES = 8


def _cdiv(a, b):
    return (a + b - 1) // b


def _round_up(v, m):
    return ((v + m - 1) // m) * m


def _logcosh_sum_kernel(x_ref, o_ref, acc_ref, *, n_valid, tn, total_cols,
                        ragged, compute_dtype):
    """grid = (batch_blocks, feature_blocks); axis 1 is the reduction axis."""
    k = pl.program_id(1)

    @pl.when(k == 0)
    def _():
        acc_ref[...] = jnp.zeros_like(acc_ref)

    col_base = k * tn  # global column offset of this feature block

    # Stream the tile in 128-lane chunks: each chunk's temporaries are only
    # (tb, 128), keeping vreg pressure low and letting the scheduler overlap
    # EUP (exp/log) with VPU adds and the VMEM accumulator traffic.
    for i in range(tn // _LANES):
        xi = x_ref[:, i * _LANES:(i + 1) * _LANES].astype(compute_dtype)
        if ragged:
            # Zero-mask lanes past the true feature extent (mandatory: the
            # out-of-bounds block region is unspecified and may be inf/NaN).
            col = col_base + i * _LANES + jax.lax.broadcasted_iota(
                jnp.int32, xi.shape, 1)
            xi = jnp.where(col < n_valid, xi, jnp.zeros_like(xi))
        a = jnp.abs(xi)
        # Hot path without the -log(2): |x| + log1p(exp(-2|x|)).
        # Zero-masked slots contribute exactly log(2); corrected in epilogue.
        val = a + jnp.log1p(jnp.exp(-2.0 * a))
        acc_ref[...] += val.astype(jnp.float32)

    @pl.when(k == pl.num_programs(1) - 1)
    def _():
        # Single cross-lane XLU reduce + deferred -log(2) correction.  Every
        # accumulated slot (real or zero-masked) carries an implicit +log(2),
        # so subtracting total_cols * log(2) is exact.
        row = jnp.sum(acc_ref[...], axis=1, keepdims=True) - total_cols * _LOG2
        o_ref[...] = row.astype(o_ref.dtype)


def logcosh_sum(x, *, max_tb=256, max_tn=2048,
                input_vmem_budget_bytes=16 * 1024 * 1024,
                compute_dtype=None):
    """x: (B, N) float (f32 or bf16) -> (B, 2) float32.

    Column 0 = sum_j log cosh(x[:, j]); column 1 = 0 (matches the torch.zeros
    init in the reference module).
    """
    B, N = x.shape
    itemsize = jnp.dtype(x.dtype).itemsize

    if compute_dtype is None:
        compute_dtype = jnp.bfloat16 if x.dtype == jnp.bfloat16 else jnp.float32

    # --- tile selection ------------------------------------------------------
    # Batch tile: multiple of 8 sublanes.  Guarantee >= 2 batch blocks when
    # possible so the "parallel" axis actually shards across v7x's 2 TCs.
    tb = min(_round_up(B, _SUBLANES), _round_up(max_tb, _SUBLANES))
    if B > _SUBLANES and _cdiv(B, tb) < 2:
        tb = _round_up(_cdiv(B, 2), _SUBLANES)

    # Feature tile: balanced across cdiv(N, max_tn) blocks, multiple of 128
    # lanes, so padding is bounded by ~blocks*128 columns.
    n128 = _round_up(N, _LANES)
    kf = _cdiv(n128, max_tn)
    tn = _round_up(_cdiv(n128, kf), _LANES)

    # Keep the double-buffered input block inside a VMEM budget that is safe
    # for all generations (incl. v7x's 64 MiB physical VMEM).
    while 2 * tb * tn * itemsize > input_vmem_budget_bytes and tn > _LANES:
        tn -= _LANES
    while 2 * tb * tn * itemsize > input_vmem_budget_bytes and tb > _SUBLANES:
        tb -= _SUBLANES

    grid_b = _cdiv(B, tb)
    grid_k = _cdiv(N, tn)
    total_cols = grid_k * tn          # slots per row actually accumulated
    ragged = (total_cols != N)        # static: mask only when needed

    kernel = functools.partial(
        _logcosh_sum_kernel, n_valid=N, tn=tn, total_cols=total_cols,
        ragged=ragged, compute_dtype=compute_dtype)

    out = pl.pallas_call(
        kernel,
        out_shape=jax.ShapeDtypeStruct((B, 1), jnp.float32),
        grid_spec=pltpu.PrefetchScalarGridSpec(
            num_scalar_prefetch=0,
            grid=(grid_b, grid_k),
            in_specs=[pl.BlockSpec((tb, tn), lambda b, k: (b, k))],
            out_specs=pl.BlockSpec((tb, 1), lambda b, k: (b, 0)),
            scratch_shapes=[pltpu.VMEM((tb, _LANES), jnp.float32)],
        ),
        compiler_params=pltpu.CompilerParams(
            dimension_semantics=("parallel", "arbitrary"),
            vmem_limit_bytes=32 * 1024 * 1024,
        ),
        cost_estimate=pl.CostEstimate(
            flops=5 * B * N,
            transcendentals=2 * B * N,
            bytes_accessed=itemsize * B * N + 4 * B,
        ),
    )(x)

    # Build the (B, 2) result outside the kernel (free in the wrapper; avoids a
    # lane-width-2 masked store inside the kernel).
    return jnp.concatenate([out, jnp.zeros_like(out)], axis=1)


def _reference(x):
    """Plain-JAX replica of the PyTorch forward (in float32)."""
    xa = jnp.abs(x.astype(jnp.float32))
    col0 = jnp.sum(xa - jax.nn.log_sigmoid(2.0 * xa) - _LOG2, axis=1)
    return jnp.stack([col0, jnp.zeros_like(col0)], axis=1)


if __name__ == "__main__":
    key = jax.random.PRNGKey(0)
    B, N = 8, 256  # small (batch, features) shape consistent with the module
    x = jax.random.normal(key, (B, N), dtype=jnp.float32)

    out = jax.block_until_ready(logcosh_sum(x))
    ref = _reference(x)
    assert out.shape == (B, 2) and out.dtype == jnp.float32
    assert jnp.allclose(out, ref, rtol=1e-4, atol=1e-3), (out, ref)

    # Ragged shape -> exercises in-kernel edge masking (no jnp.pad HBM copy).
    x2 = jax.random.normal(jax.random.PRNGKey(1), (5, 300), dtype=jnp.float32)
    out2 = jax.block_until_ready(logcosh_sum(x2))
    assert jnp.allclose(out2, _reference(x2), rtol=1e-4, atol=1e-3)

    # bf16 input -> bf16 VPU/EUP compute with f32 accumulation; B=16 also
    # exercises the two-batch-block (megacore) tiling path.
    x3 = jax.random.normal(jax.random.PRNGKey(2), (16, 384), dtype=jnp.bfloat16)
    out3 = jax.block_until_ready(logcosh_sum(x3))
    assert jnp.allclose(out3, _reference(x3), rtol=2e-2, atol=5e-1)

    print("KERNEL_OK")
</pallas_src>

<mosaic_0001>
module attributes {stable_mosaic.version = 11 : i64} {
  func.func @_logcosh_sum_kernel(%arg0: i32, %arg1: i32, %arg2: memref<8x256xf32, #tpu.memory_space<vmem>>, %arg3: memref<8x1xf32, #tpu.memory_space<vmem>>, %arg4: memref<8x128xf32, #tpu.memory_space<vmem>>) attributes {dimension_semantics = [#tpu.dimension_semantics<parallel>, #tpu.dimension_semantics<arbitrary>], iteration_bounds = array<i64: 1, 1>, scalar_prefetch = 0 : i64, scratch_operands = 1 : i64, tpu.core_type = #tpu.core_type<tc>, window_params = [{transform_indices = @transform_0, window_bounds = array<i64: 8, 256>}, {transform_indices = @transform_1, window_bounds = array<i64: 8, 1>}]} {
    %c0_i32 = arith.constant 0 : i32
    %0 = arith.cmpi eq, %arg1, %c0_i32 : i32
    %1 = arith.extui %0 : i1 to i32
    %c0_i32_0 = arith.constant 0 : i32
    %2 = arith.cmpi ne, %1, %c0_i32_0 : i32
    scf.if %2 {
      %cst_14 = arith.constant 0.000000e+00 : f32
      %26 = vector.broadcast %cst_14 : f32 to vector<8x128xf32>
      %c0_15 = arith.constant 0 : index
      %c0_16 = arith.constant 0 : index
      %27 = vector.load %arg4[%c0_15, %c0_16] : memref<8x128xf32, #tpu.memory_space<vmem>>, vector<8x128xf32>
      tpu.vector_store %arg4[%c0_15, %c0_16], %26 {strides = array<i32>} : memref<8x128xf32, #tpu.memory_space<vmem>>, vector<8x128xf32>,
    } else {
    }
    %c0 = arith.constant 0 : index
    %c0_1 = arith.constant 0 : index
    %3 = vector.load %arg2[%c0, %c0_1] : memref<8x256xf32, #tpu.memory_space<vmem>>, vector<8x128xf32>
    %4 = math.absf %3 : vector<8x128xf32>
    %cst = arith.constant -2.000000e+00 : f32
    %5 = vector.broadcast %cst : f32 to vector<8x128xf32>
    %6 = arith.mulf %5, %4 : vector<8x128xf32>
    %7 = math.exp %6 : vector<8x128xf32>
    %8 = math.log1p %7 : vector<8x128xf32>
    %9 = arith.addf %4, %8 : vector<8x128xf32>
    %c0_2 = arith.constant 0 : index
    %c0_3 = arith.constant 0 : index
    %10 = vector.load %arg4[%c0_2, %c0_3] : memref<8x128xf32, #tpu.memory_space<vmem>>, vector<8x128xf32>
    %11 = arith.addf %10, %9 : vector<8x128xf32>
    %c0_4 = arith.constant 0 : index
    %c0_5 = arith.constant 0 : index
    %12 = vector.load %arg4[%c0_4, %c0_5] : memref<8x128xf32, #tpu.memory_space<vmem>>, vector<8x128xf32>
    tpu.vector_store %arg4[%c0_4, %c0_5], %11 {strides = array<i32>} : memref<8x128xf32, #tpu.memory_space<vmem>>, vector<8x128xf32>,
    %c0_6 = arith.constant 0 : index
    %c128 = arith.constant 128 : index
    %13 = vector.load %arg2[%c0_6, %c128] : memref<8x256xf32, #tpu.memory_space<vmem>>, vector<8x128xf32>
    %14 = math.absf %13 : vector<8x128xf32>
    %cst_7 = arith.constant -2.000000e+00 : f32
    %15 = vector.broadcast %cst_7 : f32 to vector<8x128xf32>
    %16 = arith.mulf %15, %14 : vector<8x128xf32>
    %17 = math.exp %16 : vector<8x128xf32>
    %18 = math.log1p %17 : vector<8x128xf32>
    %19 = arith.addf %14, %18 : vector<8x128xf32>
    %c0_8 = arith.constant 0 : index
    %c0_9 = arith.constant 0 : index
    %20 = vector.load %arg4[%c0_8, %c0_9] : memref<8x128xf32, #tpu.memory_space<vmem>>, vector<8x128xf32>
    %21 = arith.addf %20, %19 : vector<8x128xf32>
    %c0_10 = arith.constant 0 : index
    %c0_11 = arith.constant 0 : index
    %22 = vector.load %arg4[%c0_10, %c0_11] : memref<8x128xf32, #tpu.memory_space<vmem>>, vector<8x128xf32>
    tpu.vector_store %arg4[%c0_10, %c0_11], %21 {strides = array<i32>} : memref<8x128xf32, #tpu.memory_space<vmem>>, vector<8x128xf32>,
    %c0_i32_12 = arith.constant 0 : i32
    %23 = arith.cmpi eq, %arg1, %c0_i32_12 : i32
    %24 = arith.extui %23 : i1 to i32
    %c0_i32_13 = arith.constant 0 : i32
    %25 = arith.cmpi ne, %24, %c0_i32_13 : i32
    scf.if %25 {
      %c0_14 = arith.constant 0 : index
      %c0_15 = arith.constant 0 : index
      %26 = vector.load %arg4[%c0_14, %c0_15] : memref<8x128xf32, #tpu.memory_space<vmem>>, vector<8x128xf32>
      %cst_16 = arith.constant dense<0.000000e+00> : vector<8xf32>
      %27 = vector.multi_reduction <add>, %26, %cst_16 [1] : vector<8x128xf32> to vector<8xf32>
      %28 = vector.shape_cast %27 : vector<8xf32> to vector<8x1xf32>
      %cst_17 = arith.constant 177.445679 : f32
      %29 = vector.broadcast %cst_17 : f32 to vector<8x1xf32>
      %30 = arith.subf %28, %29 : vector<8x1xf32>
      %c0_18 = arith.constant 0 : index
      %c0_19 = arith.constant 0 : index
      %31 = vector.load %arg3[%c0_18, %c0_19] : memref<8x1xf32, #tpu.memory_space<vmem>>, vector<8x1xf32>
      tpu.vector_store %arg3[%c0_18, %c0_19], %30 {strides = array<i32>} : memref<8x1xf32, #tpu.memory_space<vmem>>, vector<8x1xf32>,
    } else {
    }
    return
  }
  func.func @transform_0(%arg0: i32, %arg1: i32) -> (i32, i32) {
    %c0_i32 = arith.constant 0 : i32
    return %arg0, %arg1 : i32, i32
  }
  func.func @transform_1(%arg0: i32, %arg1: i32) -> (i32, i32) {
    %c0_i32 = arith.constant 0 : i32
    %c0_i32_0 = arith.constant 0 : i32
    return %arg0, %c0_i32 : i32, i32
  }
}

</mosaic_0001>

<llo_original>
// kernel: tpu_custom_call.1
$region0: #{tpu_custom_call.1}
  #allocation0 [shape = 'u32[]', space=smem, size = 0x4, offset = 0x4, fixed_abs, tag = 'smem constant byte address 0x4 - core index']
  #allocation1 [shape = 'u32[144,128]{1,0:T(1,128)}', space=vmem, size = 0x12000, scoped, tag = 'internal scratch']
  #allocation2 [shape = 'f32[8,128]{1,0:T(8,128)}', space=vmem, size = 0x1000, scoped, tag = 'scratch operand']
  %s0 = inlined_call_operand.hbm [shape: f32[8,256], index: 0, kind: input, shape index: {}]
  %s1 = inlined_call_operand.vmem [shape: f32[8,1], index: 1, kind: output, shape index: {}]
  %s2 = sld [smem:[#allocation0]]
  $region26: #{tpu_custom_call.1} parent=0
    _
  %s4 = ssub.s32 1, %s2
  %s5 = scalar_select 0, %s4, %s2
  $region1: #{tpu_custom_call.1} parent=0
    #allocation3 [shape = 'u8[8192]{0}', space=vmem, size = 0x2000, scoped, tag = 'input window, operand 0, single buffered']
    #allocation4 [shape = 's32[1]{0}', space=sflag, size = 0x4, scoped, tag = 'scoped memory for tpu_custom_call.1']
    %6 = vsyncpa [#allocation4], 0
    // Predicated region
    $region2: #{tpu_custom_call.1} parent=1 // pred_check
      _
    $region3: #{tpu_custom_call.1} parent=1 // pred_check_branch
      %8 = sbr.rel (0) target = $region5
    $region4: #{tpu_custom_call.1} parent=1 // pred_region
      %s10 = ssub.s32 256, 256
      %11 = vsyncadd [#allocation4], %s10
      %s13 = sshll.u32 [#allocation3], 4
      %s14 = int_to_ptr.vmem [resolvable:$true] %s13
      %16 = dma.hbm_to_vmem [thread:$0]  %s0, 256, %s14, [#allocation4]
    $region5: #{tpu_custom_call.1} parent=1 // pred_fallthru
      _
    // Predicated region
    $region6: #{tpu_custom_call.1} parent=1 // pred_check
      _
    $region7: #{tpu_custom_call.1} parent=1 // pred_check_branch
      %18 = sbr.rel (0) target = $region9
    $region8: #{tpu_custom_call.1} parent=1 // pred_region
      %19 = dma.done [#allocation4], 256
    $region9: #{tpu_custom_call.1} parent=1 // pred_fallthru
      _
    %p20 = scmp.eq.s32.totalorder 0, 0
    // Predicated region
    $region10: #{tpu_custom_call.1} parent=1 // pred_check
      %p21 = pneg %p20
    $region11: #{tpu_custom_call.1} parent=1 // pred_check_branch
      %23 = sbr.rel (%p21) target = $region13
    $region12: #{tpu_custom_call.1} parent=1 // pred_region
      %24 = vst [vmem:[#allocation2] sm:$0xff] 0.0
    $region13: #{tpu_custom_call.1} parent=1 // pred_fallthru
      _
    %v25 = vld [vmem:[#allocation3] sm:$0xff]
    %v26 = vand.u32 2147483647, %v25
    %v27 = vmul.f32 %v26, -2.0
    %v28 = vmul.f32 %v27, 1.442695
    %v29 = vpow.pop %v28
    %v30 = vadd.f32 %v29, 1.0
    %v31 = vlog2.pop %v30
    %v32 = vmul.f32 %v31, 0.6931472
    %v33 = vmul.f32 -0.5, %v29
    %v34 = vadd.f32 %v33, 1.0
    %v35 = vmul.f32 %v34, %v29
    %v36 = vand.u32 2147483647, %v29
    %vm37 = vcmp.lt.f32.partialorder %v36, 0.0004427343
    %v38 = vsel %vm37, %v35, %v32
    %v39 = vadd.f32 %v26, %v38
    %v40 = vld [vmem:[#allocation2] sm:$0xff]
    %v41 = vadd.f32 %v40, %v39
    %42 = vst [vmem:[#allocation2] sm:$0xff] %v41
    %v43 = vld [vmem:[#allocation3 + $0x8] sm:$0xff]
    %v44 = vand.u32 2147483647, %v43
    %v45 = vmul.f32 %v44, -2.0
    %v46 = vmul.f32 %v45, 1.442695
    %v47 = vpow.pop %v46
    %v48 = vadd.f32 %v47, 1.0
    %v49 = vlog2.pop %v48
    %v50 = vmul.f32 %v49, 0.6931472
    %v51 = vmul.f32 -0.5, %v47
    %v52 = vadd.f32 %v51, 1.0
    %v53 = vmul.f32 %v52, %v47
    %v54 = vand.u32 2147483647, %v47
    %vm55 = vcmp.lt.f32.partialorder %v54, 0.0004427343
    %v56 = vsel %vm55, %v53, %v50
    %v57 = vadd.f32 %v44, %v56
    %v58 = vld [vmem:[#allocation2] sm:$0xff]
    %v59 = vadd.f32 %v58, %v57
    %60 = vst [vmem:[#allocation2] sm:$0xff] %v59
    // Predicated region
    $region14: #{tpu_custom_call.1} parent=1 // pred_check
      %p61 = pneg %p20
    $region15: #{tpu_custom_call.1} parent=1 // pred_check_branch
      %63 = sbr.rel (%p61) target = $region17
    $region16: #{tpu_custom_call.1} parent=1 // pred_region
      %v64 = vld [vmem:[#allocation2] sm:$0xff]
      %65 = vadd.xlane.f32.xlu0 %v64
      %v66 = vpop.xlane.xlu0 %65
      %v67 = vsub.f32 %v66, 177.44568
      %vm68 = vcmask 7168
      %69 = vst.msk [vmem:[%s1] sm:$0xff] %vm68, %v67
    $region17: #{tpu_custom_call.1} parent=1 // pred_fallthru
      _
    // Predicated region
    $region18: #{tpu_custom_call.1} parent=1 // pred_check
      _
    $region19: #{tpu_custom_call.1} parent=1 // pred_check_branch
      %71 = sbr.rel (0) target = $region21
    $region20: #{tpu_custom_call.1} parent=1 // pred_region
      _
    $region21: #{tpu_custom_call.1} parent=1 // pred_fallthru
      _
    // Predicated region
    $region22: #{tpu_custom_call.1} parent=1 // pred_check
      _
    $region23: #{tpu_custom_call.1} parent=1 // pred_check_branch
      %73 = sbr.rel (0) target = $region25
    $region24: #{tpu_custom_call.1} parent=1 // pred_region
      _
    $region25: #{tpu_custom_call.1} parent=1 // pred_fallthru
      _
    %74 = vsyncpa [#allocation4], 1

</llo_original>
